<compile_context>
chip_gen: v6e
topology: v6e:2x2x1
jax: 0.10.0
libtpu: 0.0.40
codegen_flags: <defaults>
</compile_context>

<pallas_src>
import jax
import jax.numpy as jnp
from jax.experimental import pallas as pl
from jax.experimental.pallas import tpu as pltpu


def _round_up(x, m):
    return ((x + m - 1) // m) * m


def _cdiv(a, b):
    return -(-a // b)


def _qus_embedding_kernel(ids_ref, fused_ref, out_ref):
    # ids_ref:   (TM, 1)   int32  token ids for this tile
    # fused_ref: (Vp, Hp)  bf16   pre-fused (table @ W^T + b), grid-invariant
    # out_ref:   (TM, Hp)  f32
    ids = ids_ref[...]                                    # (TM, 1)
    tm = ids.shape[0]
    vp = fused_ref.shape[0]

    # One-hot row select on the MXU: (TM, Vp) @ (Vp, Hp) -> (TM, Hp).
    # Build the one-hot in f32 on the VPU (v5e has no bf16 VALU) and cast to
    # the fused dtype only at the matmul boundary; 0/1 are exact in bf16.
    # NOTE: out-of-range / negative ids yield an all-zero output row (no
    # bounds error) instead of raising like torch.nn.Embedding.
    iota = jax.lax.broadcasted_iota(jnp.int32, (tm, vp), 1)
    onehot = (iota == ids).astype(jnp.float32).astype(fused_ref.dtype)
    out_ref[...] = jnp.dot(onehot, fused_ref[...],
                           preferred_element_type=jnp.float32)


def prepare_qus_embedding_params(table, weight, bias, *, fused_dtype=jnp.bfloat16):
    """Run ONCE per weight update (hoisted out of the per-call path).

    table: (V, E) embedding table; weight: (H, E) torch Linear layout; bias: (H,).
    Returns (fused_p, H): padded (Vp, Hp) fused table with bias folded in.
    Use fused_dtype=jnp.float32 if f32-level fidelity is required.
    """
    V, E = table.shape
    H = bias.shape[0]
    # Exact refactoring: (onehot @ table) @ W^T + b == onehot @ (table @ W^T + b).
    fused = jnp.dot(table.astype(jnp.float32), weight.astype(jnp.float32).T)
    fused = fused + bias.astype(jnp.float32)[None, :]     # (V, H)
    Hp = _round_up(H, 128)
    Vp = _round_up(V, 128)
    fused_p = (jnp.zeros((Vp, Hp), fused_dtype)
               .at[:V, :H].set(fused.astype(fused_dtype)))
    return fused_p, H


def qus_embedding_forward(qus, fused_p, hidden_size, *, max_token_tile=512):
    """qus: (B, L) int ids; fused_p: (Vp, Hp) from prepare_qus_embedding_params.

    Returns (B, L, hidden_size) float32, matching Embedding -> Linear.
    """
    B, L = qus.shape
    T = B * L
    Vp, Hp = fused_p.shape

    # Tile choice: even number of grid steps (>= 2) so the "parallel" token
    # axis occupies both v7x TensorCores, sized to minimize padded rows while
    # staying step-overhead-friendly (tiles up to max_token_tile rows).
    n_steps = max(2, _cdiv(T, max_token_tile))
    if n_steps % 2:
        n_steps += 1
    tile = _round_up(max(_cdiv(T, n_steps), 8), 8)
    Tp = _round_up(T, tile)
    grid = Tp // tile

    flat = qus.reshape(T).astype(jnp.int32)
    if Tp == T:
        ids = flat[:, None]
    else:
        ids = jnp.zeros((Tp,), jnp.int32).at[:T].set(flat)[:, None]

    # Explicit VMEM budget (per TensorCore); see header comment for the v7x
    # switchover to the HBM-gather path.
    itemsize = jnp.dtype(fused_p.dtype).itemsize
    needed = (Vp * Hp * itemsize          # fused table, Buffered(1)
              + 2 * tile * Hp * 4         # f32 output, double-buffered
              + 2 * tile * 128 * 4        # ids, lane-padded, double-buffered
              + tile * Vp * itemsize)     # one-hot intermediate
    vmem_limit = int(min(max(needed + (4 << 20), 32 << 20), 60 << 20))

    out_flat = pl.pallas_call(
        _qus_embedding_kernel,
        out_shape=jax.ShapeDtypeStruct((Tp, Hp), jnp.float32),
        grid_spec=pltpu.PrefetchScalarGridSpec(
            num_scalar_prefetch=0,
            grid=(grid,),
            in_specs=[
                pl.BlockSpec((tile, 1), lambda i: (i, 0)),
                # Grid-invariant: never re-DMAed, so keep a single VMEM buffer.
                pl.BlockSpec((Vp, Hp), lambda i: (0, 0),
                             pipeline_mode=pl.Buffered(1)),
            ],
            out_specs=pl.BlockSpec((tile, Hp), lambda i: (i, 0)),
        ),
        compiler_params=pltpu.CompilerParams(
            # Token axis is independent -> shards across v7x's 2 TensorCores.
            dimension_semantics=("parallel",),
            vmem_limit_bytes=vmem_limit),
    )(ids, fused_p)

    return out_flat[:T, :hidden_size].reshape(B, L, hidden_size)


if __name__ == "__main__":
    # Deterministic synthetic parameters (no glove file is loaded).
    # TODO(synk): glove init is replaced by deterministic random init.
    key = jax.random.PRNGKey(0)
    k_tab, k_w, k_b, k_ids = jax.random.split(key, 4)

    word_size = 128        # vocabulary size V
    embedding_dim = 32     # E
    hidden_size = 32       # H
    B, L = 4, 96           # T = 384 -> two 192-row tiles, zero token padding

    table = jax.random.normal(k_tab, (word_size, embedding_dim), jnp.float32) * 0.1
    weight = jax.random.normal(k_w, (hidden_size, embedding_dim), jnp.float32) * 0.1
    bias = jax.random.normal(k_b, (hidden_size,), jnp.float32) * 0.1
    qus = jax.random.randint(k_ids, (B, L), 0, word_size, jnp.int32)

    # Pre-fuse once per weight update (not per forward call).
    fused_p, H = prepare_qus_embedding_params(table, weight, bias)
    fused_p = jax.block_until_ready(fused_p)

    out = qus_embedding_forward(qus, fused_p, H)
    out = jax.block_until_ready(out)

    # Reference check in plain JAX (same math as the PyTorch module).
    # Tolerance relaxed for the bf16 fused-table storage.
    ref = jnp.take(table, qus, axis=0) @ weight.T + bias
    assert out.shape == (B, L, hidden_size)
    assert jnp.allclose(out, ref, atol=1e-2, rtol=1e-2), "mismatch vs reference"

    print("KERNEL_OK")
</pallas_src>

<mosaic_0001>
module attributes {stable_mosaic.version = 11 : i64} {
  func.func @_qus_embedding_kernel(%arg0: i32, %arg1: memref<192x1xi32, #tpu.memory_space<vmem>>, %arg2: memref<128x128xbf16, #tpu.memory_space<vmem>>, %arg3: memref<192x128xf32, #tpu.memory_space<vmem>>) attributes {dimension_semantics = [#tpu.dimension_semantics<parallel>], iteration_bounds = array<i64: 2>, scalar_prefetch = 0 : i64, scratch_operands = 0 : i64, tpu.core_type = #tpu.core_type<tc>, window_params = [{transform_indices = @transform_0, window_bounds = array<i64: 192, 1>}, {pipeline_mode = #tpu.pipeline_mode<synchronous>, transform_indices = @transform_1, window_bounds = array<i64: 128, 128>}, {transform_indices = @transform_2, window_bounds = array<i64: 192, 128>}]} {
    %c0 = arith.constant 0 : index
    %c0_0 = arith.constant 0 : index
    %0 = vector.load %arg1[%c0, %c0_0] : memref<192x1xi32, #tpu.memory_space<vmem>>, vector<192x1xi32>
    %1 = tpu.iota {dimensions = array<i32: 1>} : vector<192x128xi32>
    %2 = vector.broadcast %0 : vector<192x1xi32> to vector<192x128xi32>
    %3 = arith.cmpi eq, %1, %2 : vector<192x128xi32>
    %4 = arith.extui %3 : vector<192x128xi1> to vector<192x128xi32>
    %5 = arith.sitofp %4 : vector<192x128xi32> to vector<192x128xf32>
    %6 = arith.truncf %5 : vector<192x128xf32> to vector<192x128xbf16>
    %c0_1 = arith.constant 0 : index
    %c0_2 = arith.constant 0 : index
    %7 = vector.load %arg2[%c0_1, %c0_2] : memref<128x128xbf16, #tpu.memory_space<vmem>>, vector<128x128xbf16>
    %cst = arith.constant dense<0.000000e+00> : vector<192x128xf32>
    %8 = tpu.matmul %6, %7, %cst {dimension_numbers = #tpu.dot_dimension_numbers<[1], [0], [0], [1], [0, 0, 1, 1], [], []>} : vector<192x128xbf16>, vector<128x128xbf16>, vector<192x128xf32> -> vector<192x128xf32>
    %c0_3 = arith.constant 0 : index
    %c0_4 = arith.constant 0 : index
    %9 = vector.load %arg3[%c0_3, %c0_4] : memref<192x128xf32, #tpu.memory_space<vmem>>, vector<192x128xf32>
    tpu.vector_store %arg3[%c0_3, %c0_4], %8 {strides = array<i32>} : memref<192x128xf32, #tpu.memory_space<vmem>>, vector<192x128xf32>,
    return
  }
  func.func @transform_0(%arg0: i32) -> (i32, i32) {
    %c0_i32 = arith.constant 0 : i32
    %c0_i32_0 = arith.constant 0 : i32
    return %arg0, %c0_i32 : i32, i32
  }
  func.func @transform_1(%arg0: i32) -> (i32, i32) {
    %c0_i32 = arith.constant 0 : i32
    %c0_i32_0 = arith.constant 0 : i32
    %c0_i32_1 = arith.constant 0 : i32
    return %c0_i32, %c0_i32_0 : i32, i32
  }
  func.func @transform_2(%arg0: i32) -> (i32, i32) {
    %c0_i32 = arith.constant 0 : i32
    %c0_i32_0 = arith.constant 0 : i32
    return %arg0, %c0_i32 : i32, i32
  }
}

</mosaic_0001>

<llo_original>
// kernel: tpu_custom_call.1
$region0: #{tpu_custom_call.1}
  #allocation0 [shape = 'u32[]', space=smem, size = 0x4, offset = 0x4, fixed_abs, tag = 'smem constant byte address 0x4 - core index']
  #allocation1 [shape = 'u32[144,128]{1,0:T(1,128)}', space=vmem, size = 0x12000, scoped, tag = 'internal scratch']
  %s0 = inlined_call_operand.vmem [shape: s32[384,1], index: 0, kind: input, shape index: {}]
  %s1 = inlined_call_operand.vmem [shape: bf16[128,128], index: 1, kind: input, shape index: {}]
  %s2 = inlined_call_operand.hbm [shape: f32[384,128], index: 2, kind: output, shape index: {}]
  %s3 = sld [smem:[#allocation0]]
  $region41: #{tpu_custom_call.1} parent=0
    _
  %s5 = ssub.s32 1, %s3
  %s6 = scalar_select 0, %s5, %s3
  $region1: #{tpu_custom_call.1} parent=0
    #allocation2 [shape = 'u8[196608]{0}', space=vmem, size = 0x30000, scoped, tag = 'output window, operand 0']
    #allocation3 [shape = 's32[2]{0}', space=sflag, size = 0x8, scoped, tag = 'scoped memory for tpu_custom_call.1']
    %7 = vsyncpa [#allocation3], 0
    %s8 = scalar_lea.sflag [#allocation3], 1
    %9 = vsyncpa %s8, 0
    loop: start=0, step=1, limit=4
    $region2: #{tpu_custom_call.1} parent=1 // loop_pre_header
      _
    $region3: #{tpu_custom_call.1} parent=1 // loop_header
      %s11 = sphi 0, %s15
      %p12 = scmp.ge.s32.totalorder %s11, 4
      %s21 = sphi 0, %s23
      %s24 = sphi 0, %s21
      %s25 = sphi 0, %s24
      %s41 = sphi 0, %s25
      %s45 = sphi 0, %s45
      %s47 = sphi 0, %s45
      %s48 = sphi 0, %s47
      %s62 = sphi 0, %s48
      %s68 = sphi 0, %s70
      %s71 = sphi 0, %s68
      %s72 = sphi 0, %s71
      %s88 = sphi 0, %s72
    $region4: #{tpu_custom_call.1} parent=1 // loop_header_branch
      %14 = sbr.rel (%p12) target = $region8
    $region5: #{tpu_custom_call.1} parent=1 // loop_body
      %s16 = ssub.s32 %s11, 1
      %s17 = ssub.s32 %s11, 2
      %s18 = sadd.s32 %s11, 1
      %s19 = ssub.s32 %s11, %s18
      %p20 = scmp.eq.s32.totalorder %s19, 0
      %s22 = sadd.s32 %s21, 1
      %s23 = scalar_select %p20, %s21, %s22
      %p26 = pneg %p20
      %p27 = scmp.eq.s32.totalorder %s11, 1
      %p28 = por %p26, %p27
      %p29 = scmp.ne.s32.totalorder %s21, %s24
      %p30 = scmp.eq.s32.totalorder %s11, 0
      %p31 = por %p29, %p30
      %p32 = scmp.ne.s32.totalorder %s21, %s24
      %p33 = scmp.eq.s32.totalorder %s16, 1
      %p34 = por %p32, %p33
      %p35 = scmp.ne.s32.totalorder %s24, %s25
      %p36 = scmp.eq.s32.totalorder %s16, 0
      %p37 = por %p35, %p36
      %p38 = scmp.ne.s32.totalorder %s24, %s25
      %p39 = scmp.eq.s32.totalorder %s17, 1
      %p40 = por %p38, %p39
      %p42 = scmp.ne.s32.totalorder %s25, %s41
      %p43 = scmp.eq.s32.totalorder %s17, 0
      %p44 = por %p42, %p43
      %s46 = sadd.s32 %s45, 1
      %p49 = scmp.eq.s32.totalorder %s11, 1
      %p50 = scmp.ne.s32.totalorder %s45, %s47
      %p51 = scmp.eq.s32.totalorder %s11, 0
      %p52 = por %p50, %p51
      %p53 = scmp.ne.s32.totalorder %s45, %s47
      %p54 = scmp.eq.s32.totalorder %s16, 1
      %p55 = por %p53, %p54
      %p56 = scmp.ne.s32.totalorder %s47, %s48
      %p57 = scmp.eq.s32.totalorder %s16, 0
      %p58 = por %p56, %p57
      %p59 = scmp.ne.s32.totalorder %s47, %s48
      %p60 = scmp.eq.s32.totalorder %s17, 1
      %p61 = por %p59, %p60
      %p63 = scmp.ne.s32.totalorder %s48, %s62
      %p64 = scmp.eq.s32.totalorder %s17, 0
      %p65 = por %p63, %p64
      %s66 = ssub.s32 %s11, %s18
      %p67 = scmp.eq.s32.totalorder %s66, 0
      %s69 = sadd.s32 %s68, 1
      %s70 = scalar_select %p67, %s68, %s69
      %p73 = pneg %p67
      %p74 = scmp.eq.s32.totalorder %s11, 1
      %p75 = por %p73, %p74
      %p76 = scmp.ne.s32.totalorder %s68, %s71
      %p77 = scmp.eq.s32.totalorder %s11, 0
      %p78 = por %p76, %p77
      %p79 = scmp.ne.s32.totalorder %s68, %s71
      %p80 = scmp.eq.s32.totalorder %s16, 1
      %p81 = por %p79, %p80
      %p82 = scmp.ne.s32.totalorder %s71, %s72
      %p83 = scmp.eq.s32.totalorder %s16, 0
      %p84 = por %p82, %p83
      %p85 = scmp.ne.s32.totalorder %s71, %s72
      %p86 = scmp.eq.s32.totalorder %s17, 1
      %p87 = por %p85, %p86
      %p89 = scmp.ne.s32.totalorder %s72, %s88
      %p90 = scmp.eq.s32.totalorder %s17, 0
      %p91 = por %p89, %p90
      %p92 = scmp.le.s32.totalorder 1, %s11
      %p93 = scmp.lt.s32.totalorder %s11, 3
      %p94 = pnand %p92, %p93
      %p95 = pneg %p94
      // Predicated region
      $region9: #{tpu_custom_call.1} parent=5 // pred_check
        _
      $region10: #{tpu_custom_call.1} parent=5 // pred_check_branch
        %97 = sbr.rel (%p94) target = $region12
      $region11: #{tpu_custom_call.1} parent=5 // pred_region
        %s98 = ssub.s32 %s11, 1
        // Predicated region
        $region13: #{tpu_custom_call.1} parent=11 // pred_check
          %p99 = pneg %p58
        $region14: #{tpu_custom_call.1} parent=11 // pred_check_branch
          %101 = sbr.rel (%p99) target = $region16
        $region15: #{tpu_custom_call.1} parent=11 // pred_region
          _
        $region16: #{tpu_custom_call.1} parent=11 // pred_fallthru
          _
      $region12: #{tpu_custom_call.1} parent=5 // pred_fallthru
        _
      %p102 = scmp.lt.s32.totalorder %s11, 2
      // Predicated region
      $region17: #{tpu_custom_call.1} parent=5 // pred_check
        %p103 = pneg %p102
      $region18: #{tpu_custom_call.1} parent=5 // pred_check_branch
        %105 = sbr.rel (%p103) target = $region20
      $region19: #{tpu_custom_call.1} parent=5 // pred_region
        // Predicated region
        $region21: #{tpu_custom_call.1} parent=19 // pred_check
          %p106 = pneg %p31
        $region22: #{tpu_custom_call.1} parent=19 // pred_check_branch
          %108 = sbr.rel (%p106) target = $region24
        $region23: #{tpu_custom_call.1} parent=19 // pred_region
          %s109 = smul.u32 24, %s11
          %p110 = scmp.lt.s32.totalorder %s109, 47
          %s111 = scalar_select %p110, %s109, 47
          %s112 = smul.addr %s111, 8
          %s113 = scalar_lea.vmem %s0, %s112
          %s114 = smul.u32 24, %s11
        $region24: #{tpu_custom_call.1} parent=19 // pred_fallthru
          _
      $region20: #{tpu_custom_call.1} parent=5 // pred_fallthru
        _
      %p115 = scmp.le.s32.totalorder 1, %s11
      %p116 = scmp.lt.s32.totalorder %s11, 3
      %p117 = pnand %p115, %p116
      %p118 = pneg %p117
      // Predicated region
      $region25: #{tpu_custom_call.1} parent=5 // pred_check
        _
      $region26: #{tpu_custom_call.1} parent=5 // pred_check_branch
        %120 = sbr.rel (%p117) target = $region28
      $region27: #{tpu_custom_call.1} parent=5 // pred_region
        %s121 = ssub.s32 %s11, 1
        %s122 = smul.u32 24, %s16
        %p123 = scmp.lt.s32.totalorder %s122, 47
        %s124 = scalar_select %p123, %s122, 47
        %s125 = smul.addr %s124, 8
        %s126 = scalar_lea.vmem %s0, %s125
        %p127 = pneg %p37
        %p128 = pneg %p34
        %p129 = pneg %p58
        %p130 = pneg %p55
        %p131 = pneg %p84
        %p132 = pneg %p81
        %s133 = sand.u32 %s71, 1
        %s134 = scalar_lea.sflag [#allocation3], %s133
        %s135 = sand.u32 %s71, 1
        %s136 = smul.addr %s135, 192
        %s137 = scalar_lea.vmem [#allocation2], %s136
        %s138 = smul.u32 24, %s16
        %p139 = scmp.lt.s32.totalorder %s138, 47
        %s140 = scalar_select %p139, %s138, 47
        %s141 = smul.addr %s140, 8
        %s142 = scalar_lea.vmem %s0, %s141
        %s143 = smul.u32 24, %s16
        %s144 = smul.u32 24, %s16
        %v146 = vld [vmem:[%s142] sm:$0xff]
        %v147 = vld [vmem:[%s142 + $0x8] sm:$0xff]
        %v148 = vld [vmem:[%s142 + $0x10] sm:$0xff]
        %v149 = vld [vmem:[%s142 + $0x18] sm:$0xff]
        %v150 = vld [vmem:[%s142 + $0x20] sm:$0xff]
        %v151 = vld [vmem:[%s142 + $0x28] sm:$0xff]
        %v152 = vld [vmem:[%s142 + $0x30] sm:$0xff]
        %v153 = vld [vmem:[%s142 + $0x38] sm:$0xff]
        %v154 = vld [vmem:[%s142 + $0x40] sm:$0xff]
        %v155 = vld [vmem:[%s142 + $0x48] sm:$0xff]
        %v156 = vld [vmem:[%s142 + $0x50] sm:$0xff]
        %v157 = vld [vmem:[%s142 + $0x58] sm:$0xff]
        %v158 = vld [vmem:[%s142 + $0x60] sm:$0xff]
        %v159 = vld [vmem:[%s142 + $0x68] sm:$0xff]
        %v160 = vld [vmem:[%s142 + $0x70] sm:$0xff]
        %v161 = vld [vmem:[%s142 + $0x78] sm:$0xff]
        %v162 = vld [vmem:[%s142 + $0x80] sm:$0xff]
        %v163 = vld [vmem:[%s142 + $0x88] sm:$0xff]
        %v164 = vld [vmem:[%s142 + $0x90] sm:$0xff]
        %v165 = vld [vmem:[%s142 + $0x98] sm:$0xff]
        %v166 = vld [vmem:[%s142 + $0xa0] sm:$0xff]
        %v167 = vld [vmem:[%s142 + $0xa8] sm:$0xff]
        %v168 = vld [vmem:[%s142 + $0xb0] sm:$0xff]
        %v169 = vld [vmem:[%s142 + $0xb8] sm:$0xff]
        %v170 = vlaneseq
        %v171 = vand.u32 %v170, 127
        %172 = vset.pattern.permute.xlu0 0
        %173 = vperm.xlu0 %172, %v146
        %v174 = vpop.permute.xlu0 %173
        %175 = vset.pattern.permute.xlu0 0
        %176 = vperm.xlu0 %175, %v147
        %v177 = vpop.permute.xlu0 %176
        %178 = vset.pattern.permute.xlu0 0
        %179 = vperm.xlu0 %178, %v148
        %v180 = vpop.permute.xlu0 %179
        %181 = vset.pattern.permute.xlu0 0
        %182 = vperm.xlu0 %181, %v149
        %v183 = vpop.permute.xlu0 %182
        %184 = vset.pattern.permute.xlu0 0
        %185 = vperm.xlu0 %184, %v150
        %v186 = vpop.permute.xlu0 %185
        %187 = vset.pattern.permute.xlu0 0
        %188 = vperm.xlu0 %187, %v151
        %v189 = vpop.permute.xlu0 %188
        %190 = vset.pattern.permute.xlu0 0
        %191 = vperm.xlu0 %190, %v152
        %v192 = vpop.permute.xlu0 %191
        %193 = vset.pattern.permute.xlu0 0
        %194 = vperm.xlu0 %193, %v153
        %v195 = vpop.permute.xlu0 %194
        %196 = vset.pattern.permute.xlu0 0
        %197 = vperm.xlu0 %196, %v154
        %v198 = vpop.permute.xlu0 %197
        %199 = vset.pattern.permute.xlu0 0
        %200 = vperm.xlu0 %199, %v155
        %v201 = vpop.permute.xlu0 %200
        %202 = vset.pattern.permute.xlu0 0
        %203 = vperm.xlu0 %202, %v156
        %v204 = vpop.permute.xlu0 %203
        %205 = vset.pattern.permute.xlu0 0
        %206 = vperm.xlu0 %205, %v157
        %v207 = vpop.permute.xlu0 %206
        %208 = vset.pattern.permute.xlu0 0
        %209 = vperm.xlu0 %208, %v158
        %v210 = vpop.permute.xlu0 %209
        %211 = vset.pattern.permute.xlu0 0
        %212 = vperm.xlu0 %211, %v159
        %v213 = vpop.permute.xlu0 %212
        %214 = vset.pattern.permute.xlu0 0
        %215 = vperm.xlu0 %214, %v160
        %v216 = vpop.permute.xlu0 %215
        %217 = vset.pattern.permute.xlu0 0
        %218 = vperm.xlu0 %217, %v161
        %v219 = vpop.permute.xlu0 %218
        %220 = vset.pattern.permute.xlu0 0
        %221 = vperm.xlu0 %220, %v162
        %v222 = vpop.permute.xlu0 %221
        %223 = vset.pattern.permute.xlu0 0
        %224 = vperm.xlu0 %223, %v163
        %v225 = vpop.permute.xlu0 %224
        %226 = vset.pattern.permute.xlu0 0
        %227 = vperm.xlu0 %226, %v164
        %v228 = vpop.permute.xlu0 %227
        %229 = vset.pattern.permute.xlu0 0
        %230 = vperm.xlu0 %229, %v165
        %v231 = vpop.permute.xlu0 %230
        %232 = vset.pattern.permute.xlu0 0
        %233 = vperm.xlu0 %232, %v166
        %v234 = vpop.permute.xlu0 %233
        %235 = vset.pattern.permute.xlu0 0
        %236 = vperm.xlu0 %235, %v167
        %v237 = vpop.permute.xlu0 %236
        %238 = vset.pattern.permute.xlu0 0
        %239 = vperm.xlu0 %238, %v168
        %v240 = vpop.permute.xlu0 %239
        %241 = vset.pattern.permute.xlu0 0
        %242 = vperm.xlu0 %241, %v169
        %v243 = vpop.permute.xlu0 %242
        %vm244 = vcmp.eq.s32.totalorder %v171, %v174
        %vm245 = vcmp.eq.s32.totalorder %v171, %v177
        %vm246 = vcmp.eq.s32.totalorder %v171, %v180
        %vm247 = vcmp.eq.s32.totalorder %v171, %v183
        %vm248 = vcmp.eq.s32.totalorder %v171, %v186
        %vm249 = vcmp.eq.s32.totalorder %v171, %v189
        %vm250 = vcmp.eq.s32.totalorder %v171, %v192
        %vm251 = vcmp.eq.s32.totalorder %v171, %v195
        %vm252 = vcmp.eq.s32.totalorder %v171, %v198
        %vm253 = vcmp.eq.s32.totalorder %v171, %v201
        %vm254 = vcmp.eq.s32.totalorder %v171, %v204
        %vm255 = vcmp.eq.s32.totalorder %v171, %v207
        %vm256 = vcmp.eq.s32.totalorder %v171, %v210
        %vm257 = vcmp.eq.s32.totalorder %v171, %v213
        %vm258 = vcmp.eq.s32.totalorder %v171, %v216
        %vm259 = vcmp.eq.s32.totalorder %v171, %v219
        %vm260 = vcmp.eq.s32.totalorder %v171, %v222
        %vm261 = vcmp.eq.s32.totalorder %v171, %v225
        %vm262 = vcmp.eq.s32.totalorder %v171, %v228
        %vm263 = vcmp.eq.s32.totalorder %v171, %v231
        %vm264 = vcmp.eq.s32.totalorder %v171, %v234
        %vm265 = vcmp.eq.s32.totalorder %v171, %v237
        %vm266 = vcmp.eq.s32.totalorder %v171, %v240
        %vm267 = vcmp.eq.s32.totalorder %v171, %v243
        %v268 = vsel %vm244, 1, 0
        %v269 = vsel %vm245, 1, 0
        %v270 = vsel %vm246, 1, 0
        %v271 = vsel %vm247, 1, 0
        %v272 = vsel %vm248, 1, 0
        %v273 = vsel %vm249, 1, 0
        %v274 = vsel %vm250, 1, 0
        %v275 = vsel %vm251, 1, 0
        %v276 = vsel %vm252, 1, 0
        %v277 = vsel %vm253, 1, 0
        %v278 = vsel %vm254, 1, 0
        %v279 = vsel %vm255, 1, 0
        %v280 = vsel %vm256, 1, 0
        %v281 = vsel %vm257, 1, 0
        %v282 = vsel %vm258, 1, 0
        %v283 = vsel %vm259, 1, 0
        %v284 = vsel %vm260, 1, 0
        %v285 = vsel %vm261, 1, 0
        %v286 = vsel %vm262, 1, 0
        %v287 = vsel %vm263, 1, 0
        %v288 = vsel %vm264, 1, 0
        %v289 = vsel %vm265, 1, 0
        %v290 = vsel %vm266, 1, 0
        %v291 = vsel %vm267, 1, 0
        %v292 = vcvt.s32.f32 %v268
        %v293 = vcvt.s32.f32 %v269
        %v294 = vcvt.s32.f32 %v270
        %v295 = vcvt.s32.f32 %v271
        %v296 = vcvt.s32.f32 %v272
        %v297 = vcvt.s32.f32 %v273
        %v298 = vcvt.s32.f32 %v274
        %v299 = vcvt.s32.f32 %v275
        %v300 = vcvt.s32.f32 %v276
        %v301 = vcvt.s32.f32 %v277
        %v302 = vcvt.s32.f32 %v278
        %v303 = vcvt.s32.f32 %v279
        %v304 = vcvt.s32.f32 %v280
        %v305 = vcvt.s32.f32 %v281
        %v306 = vcvt.s32.f32 %v282
        %v307 = vcvt.s32.f32 %v283
        %v308 = vcvt.s32.f32 %v284
        %v309 = vcvt.s32.f32 %v285
        %v310 = vcvt.s32.f32 %v286
        %v311 = vcvt.s32.f32 %v287
        %v312 = vcvt.s32.f32 %v288
        %v313 = vcvt.s32.f32 %v289
        %v314 = vcvt.s32.f32 %v290
        %v315 = vcvt.s32.f32 %v291
        %v316 = vpack.c.bf16 %v293, %v292
        %v317 = vpack.c.bf16 %v295, %v294
        %v318 = vpack.c.bf16 %v297, %v296
        %v319 = vpack.c.bf16 %v299, %v298
        %v320 = vpack.c.bf16 %v301, %v300
        %v321 = vpack.c.bf16 %v303, %v302
        %v322 = vpack.c.bf16 %v305, %v304
        %v323 = vpack.c.bf16 %v307, %v306
        %v324 = vpack.c.bf16 %v309, %v308
        %v325 = vpack.c.bf16 %v311, %v310
        %v326 = vpack.c.bf16 %v313, %v312
        %v327 = vpack.c.bf16 %v315, %v314
        %v328 = vld [vmem:[%s1] sm:$0xf]
        %v329 = vld [vmem:[%s1 + $0x4] sm:$0xf]
        %v330 = vld [vmem:[%s1 + $0x8] sm:$0xf]
        %v331 = vld [vmem:[%s1 + $0xc] sm:$0xf]
        %v332 = vld [vmem:[%s1 + $0x10] sm:$0xf]
        %v333 = vld [vmem:[%s1 + $0x14] sm:$0xf]
        %v334 = vld [vmem:[%s1 + $0x18] sm:$0xf]
        %v335 = vld [vmem:[%s1 + $0x1c] sm:$0xf]
        %v336 = vld [vmem:[%s1 + $0x20] sm:$0xf]
        %v337 = vld [vmem:[%s1 + $0x24] sm:$0xf]
        %v338 = vld [vmem:[%s1 + $0x28] sm:$0xf]
        %v339 = vld [vmem:[%s1 + $0x2c] sm:$0xf]
        %v340 = vld [vmem:[%s1 + $0x30] sm:$0xf]
        %v341 = vld [vmem:[%s1 + $0x34] sm:$0xf]
        %v342 = vld [vmem:[%s1 + $0x38] sm:$0xf]
        %v343 = vld [vmem:[%s1 + $0x3c] sm:$0xf]
        %v360 = vunpack.c.l.b16 %v328
        %v361 = vunpack.c.l.b16 %v329
        %v362 = vunpack.c.l.b16 %v330
        %v363 = vunpack.c.l.b16 %v331
        %v364 = vunpack.c.l.b16 %v332
        %v365 = vunpack.c.l.b16 %v333
        %v366 = vunpack.c.l.b16 %v334
        %v367 = vunpack.c.l.b16 %v335
        %v368 = vunpack.c.l.b16 %v336
        %v369 = vunpack.c.l.b16 %v337
        %v370 = vunpack.c.l.b16 %v338
        %v371 = vunpack.c.l.b16 %v339
        %v372 = vunpack.c.l.b16 %v340
        %v373 = vunpack.c.l.b16 %v341
        %v374 = vunpack.c.l.b16 %v342
        %v375 = vunpack.c.l.b16 %v343
        %v376 = vpack.c.b16 %v361, %v360
        %v377 = vpack.c.b16 %v363, %v362
        %v378 = vpack.c.b16 %v365, %v364
        %v379 = vpack.c.b16 %v367, %v366
        %v380 = vpack.c.b16 %v369, %v368
        %v381 = vpack.c.b16 %v371, %v370
        %v382 = vpack.c.b16 %v373, %v372
        %v383 = vpack.c.b16 %v375, %v374
        %392 = vmatprep.subr.bf16.mxu0 0
        %393 = vmatpush1.bf16.msra.mxu0 %v383
        %394 = vmatprep.subr.bf16.mxu0 0
        %395 = vmatpush1.bf16.msra.mxu0 %v382
        %396 = vmatprep.subr.bf16.mxu0 0
        %397 = vmatpush1.bf16.msra.mxu0 %v381
        %398 = vmatprep.subr.bf16.mxu0 0
        %399 = vmatpush1.bf16.msra.mxu0 %v380
        %400 = vmatprep.subr.bf16.mxu0 0
        %401 = vmatpush1.bf16.msra.mxu0 %v379
        %402 = vmatprep.subr.bf16.mxu0 0
        %403 = vmatpush1.bf16.msra.mxu0 %v378
        %404 = vmatprep.subr.bf16.mxu0 0
        %405 = vmatpush1.bf16.msra.mxu0 %v377
        %406 = vmatprep.subr.bf16.mxu0 0
        %407 = vmatpush1.bf16.msra.mxu0 %v376
        %408 = vmatprep.subr.bf16.mxu0 0
        %409 = vmatpush2.bf16.msra.mxu0 0
        %410 = vmatprep.subr.bf16.mxu0 0
        %411 = vmatpush2.bf16.msra.mxu0 0
        %412 = vmatprep.subr.bf16.mxu0 0
        %413 = vmatpush2.bf16.msra.mxu0 0
        %414 = vmatprep.subr.bf16.mxu0 0
        %415 = vmatpush2.bf16.msra.mxu0 0
        %416 = vmatprep.subr.bf16.mxu0 0
        %417 = vmatpush2.bf16.msra.mxu0 0
        %418 = vmatprep.subr.bf16.mxu0 0
        %419 = vmatpush2.bf16.msra.mxu0 0
        %420 = vmatprep.subr.bf16.mxu0 0
        %421 = vmatpush2.bf16.msra.mxu0 0
        %422 = vmatprep.subr.bf16.mxu0 0
        %423 = vmatpush2.bf16.msra.mxu0 0
        %424 = vmatprep.mubr.bf16.mxu0 0
        %425 = vmatmul.mubr.bf16.gmra.mxu0 %v316
        %v426 = vpop.f32.mrf.mxu0
        %v427 = vadd.f32 0.0, %v426
        %v428 = vpop.f32.mrf.mxu0
        %v429 = vpop.f32.mrf.mxu0
        %v430 = vadd.f32 0.0, %v429
        %v431 = vpop.f32.mrf.mxu0
        %432 = vmatprep.mubr.bf16.mxu0 0
        %433 = vmatmul.mubr.bf16.gmra.mxu0 %v317
        %v434 = vpop.f32.mrf.mxu0
        %v435 = vadd.f32 0.0, %v434
        %v436 = vpop.f32.mrf.mxu0
        %v437 = vpop.f32.mrf.mxu0
        %v438 = vadd.f32 0.0, %v437
        %v439 = vpop.f32.mrf.mxu0
        %440 = vmatprep.mubr.bf16.mxu0 0
        %441 = vmatmul.mubr.bf16.gmra.mxu0 %v318
        %v442 = vpop.f32.mrf.mxu0
        %v443 = vadd.f32 0.0, %v442
        %v444 = vpop.f32.mrf.mxu0
        %v445 = vpop.f32.mrf.mxu0
        %v446 = vadd.f32 0.0, %v445
        %v447 = vpop.f32.mrf.mxu0
        %448 = vmatprep.mubr.bf16.mxu0 0
        %449 = vmatmul.mubr.bf16.gmra.mxu0 %v319
        %v450 = vpop.f32.mrf.mxu0
        %v451 = vadd.f32 0.0, %v450
        %v452 = vpop.f32.mrf.mxu0
        %v453 = vpop.f32.mrf.mxu0
        %v454 = vadd.f32 0.0, %v453
        %v455 = vpop.f32.mrf.mxu0
        %456 = vmatprep.mubr.bf16.mxu0 0
        %457 = vmatmul.mubr.bf16.gmra.mxu0 %v320
        %v458 = vpop.f32.mrf.mxu0
        %v459 = vadd.f32 0.0, %v458
        %v460 = vpop.f32.mrf.mxu0
        %v461 = vpop.f32.mrf.mxu0
        %v462 = vadd.f32 0.0, %v461
        %v463 = vpop.f32.mrf.mxu0
        %464 = vmatprep.mubr.bf16.mxu0 0
        %465 = vmatmul.mubr.bf16.gmra.mxu0 %v321
        %v466 = vpop.f32.mrf.mxu0
        %v467 = vadd.f32 0.0, %v466
        %v468 = vpop.f32.mrf.mxu0
        %v469 = vpop.f32.mrf.mxu0
        %v470 = vadd.f32 0.0, %v469
        %v471 = vpop.f32.mrf.mxu0
        %472 = vmatprep.mubr.bf16.mxu0 0
        %473 = vmatmul.mubr.bf16.gmra.mxu0 %v322
        %v474 = vpop.f32.mrf.mxu0
        %v475 = vadd.f32 0.0, %v474
        %v476 = vpop.f32.mrf.mxu0
        %v477 = vpop.f32.mrf.mxu0
        %v478 = vadd.f32 0.0, %v477
        %v479 = vpop.f32.mrf.mxu0
        %480 = vmatprep.mubr.bf16.mxu0 0
        %481 = vmatmul.mubr.bf16.gmra.mxu0 %v323
        %v482 = vpop.f32.mrf.mxu0
        %v483 = vadd.f32 0.0, %v482
        %v484 = vpop.f32.mrf.mxu0
        %v485 = vpop.f32.mrf.mxu0
        %v486 = vadd.f32 0.0, %v485
        %v487 = vpop.f32.mrf.mxu0
        %488 = vmatprep.mubr.bf16.mxu0 0
        %489 = vmatmul.mubr.bf16.gmra.mxu0 %v324
        %v490 = vpop.f32.mrf.mxu0
        %v491 = vadd.f32 0.0, %v490
        %v492 = vpop.f32.mrf.mxu0
        %v493 = vpop.f32.mrf.mxu0
        %v494 = vadd.f32 0.0, %v493
        %v495 = vpop.f32.mrf.mxu0
        %496 = vmatprep.mubr.bf16.mxu0 0
        %497 = vmatmul.mubr.bf16.gmra.mxu0 %v325
        %v498 = vpop.f32.mrf.mxu0
        %v499 = vadd.f32 0.0, %v498
        %v500 = vpop.f32.mrf.mxu0
        %v501 = vpop.f32.mrf.mxu0
        %v502 = vadd.f32 0.0, %v501
        %v503 = vpop.f32.mrf.mxu0
        %504 = vmatprep.mubr.bf16.mxu0 0
        %505 = vmatmul.mubr.bf16.gmra.mxu0 %v326
        %v506 = vpop.f32.mrf.mxu0
        %v507 = vadd.f32 0.0, %v506
        %v508 = vpop.f32.mrf.mxu0
        %v509 = vpop.f32.mrf.mxu0
        %v510 = vadd.f32 0.0, %v509
        %v511 = vpop.f32.mrf.mxu0
        %512 = vmatprep.mubr.bf16.mxu0 0
        %513 = vmatmul.mubr.bf16.gmra.mxu0 %v327
        %v514 = vpop.f32.mrf.mxu0
        %v515 = vadd.f32 0.0, %v514
        %v516 = vpop.f32.mrf.mxu0
        %v517 = vpop.f32.mrf.mxu0
        %v518 = vadd.f32 0.0, %v517
        %v519 = vpop.f32.mrf.mxu0
        %520 = vdwg.mxu0
        %521 = vst [vmem:[%s137] sm:$0xff] %v427
        %522 = vst [vmem:[%s137 + $0x8] sm:$0xff] %v430
        %523 = vst [vmem:[%s137 + $0x10] sm:$0xff] %v435
        %524 = vst [vmem:[%s137 + $0x18] sm:$0xff] %v438
        %525 = vst [vmem:[%s137 + $0x20] sm:$0xff] %v443
        %526 = vst [vmem:[%s137 + $0x28] sm:$0xff] %v446
        %527 = vst [vmem:[%s137 + $0x30] sm:$0xff] %v451
        %528 = vst [vmem:[%s137 + $0x38] sm:$0xff] %v454
        %529 = vst [vmem:[%s137 + $0x40] sm:$0xff] %v459
        %530 = vst [vmem:[%s137 + $0x48] sm:$0xff] %v462
        %531 = vst [vmem:[%s137 + $0x50] sm:$0xff] %v467
        %532 = vst [vmem:[%s137 + $0x58] sm:$0xff] %v470
        %533 = vst [vmem:[%s137 + $0x60] sm:$0xff] %v475
        %534 = vst [vmem:[%s137 + $0x68] sm:$0xff] %v478
        %535 = vst [vmem:[%s137 + $0x70] sm:$0xff] %v483
        %536 = vst [vmem:[%s137 + $0x78] sm:$0xff] %v486
        %537 = vst [vmem:[%s137 + $0x80] sm:$0xff] %v491
        %538 = vst [vmem:[%s137 + $0x88] sm:$0xff] %v494
        %539 = vst [vmem:[%s137 + $0x90] sm:$0xff] %v499
        %540 = vst [vmem:[%s137 + $0x98] sm:$0xff] %v502
        %541 = vst [vmem:[%s137 + $0xa0] sm:$0xff] %v507
        %542 = vst [vmem:[%s137 + $0xa8] sm:$0xff] %v510
        %543 = vst [vmem:[%s137 + $0xb0] sm:$0xff] %v515
        %544 = vst [vmem:[%s137 + $0xb8] sm:$0xff] %v518
        %s545 = sand.u32 %s71, 1
        %s546 = scalar_lea.sflag [#allocation3], %s545
        %s547 = sand.u32 %s71, 1
        %s548 = smul.addr %s547, 192
        %s549 = scalar_lea.vmem [#allocation2], %s548
        // Predicated region
        $region29: #{tpu_custom_call.1} parent=27 // pred_check
          %p550 = pneg %p81
        $region30: #{tpu_custom_call.1} parent=27 // pred_check_branch
          %552 = sbr.rel (%p550) target = $region32
        $region31: #{tpu_custom_call.1} parent=27 // pred_region
          %s553 = smul.u32 24, %s16
          %s555 = ssub.s32 3072, 3072
          %556 = vsyncadd %s546, %s555
          %s557 = smul.addr %s553, 128
          %s558 = scalar_lea.hbm %s2, %s557
          %s559 = sshll.u32 %s549, 4
          %s560 = int_to_ptr.vmem [resolvable:$true] %s559
          %565 = dma.vmem_to_hbm [thread:$0]  %s560, 3072, %s558, %s546, 128, 128, 8
        $region32: #{tpu_custom_call.1} parent=27 // pred_fallthru
          _
      $region28: #{tpu_custom_call.1} parent=5 // pred_fallthru
        _
      %p566 = scmp.le.s32.totalorder 2, %s11
      // Predicated region
      $region33: #{tpu_custom_call.1} parent=5 // pred_check
        %p567 = pneg %p566
      $region34: #{tpu_custom_call.1} parent=5 // pred_check_branch
        %569 = sbr.rel (%p567) target = $region36
      $region35: #{tpu_custom_call.1} parent=5 // pred_region
        %s570 = ssub.s32 %s11, 2
        // Predicated region
        $region37: #{tpu_custom_call.1} parent=35 // pred_check
          %p571 = pneg %p87
        $region38: #{tpu_custom_call.1} parent=35 // pred_check_branch
          %573 = sbr.rel (%p571) target = $region40
        $region39: #{tpu_custom_call.1} parent=35 // pred_region
          %s574 = sand.u32 %s72, 1
          %s575 = scalar_lea.sflag [#allocation3], %s574
          %s576 = sand.u32 %s72, 1
          %s577 = smul.addr %s576, 192
          %s578 = scalar_lea.vmem [#allocation2], %s577
          %579 = dma.done %s575, 3072
        $region40: #{tpu_custom_call.1} parent=35 // pred_fallthru
          _
      $region36: #{tpu_custom_call.1} parent=5 // pred_fallthru
        _
    $region6: #{tpu_custom_call.1} parent=1 // loop_footer
      %s15 = sadd.s32 1, %s11
    $region7: #{tpu_custom_call.1} parent=1 // loop_footer_branch
      %10 = sbr.rel target = $region3
    $region8: #{tpu_custom_call.1} parent=1 // loop_exit
      _
    %580 = vsyncpa [#allocation3], 1
    %s581 = scalar_lea.sflag [#allocation3], 1
    %582 = vsyncpa %s581, 1

</llo_original>
